<compile_context>
chip_gen: v7x
topology: tpu7x:2x2x1
jax: 0.10.0
libtpu: 0.0.40
codegen_flags: <defaults>
</compile_context>

<pallas_src>
import jax
import jax.numpy as jnp
from jax.experimental import pallas as pl
from jax.experimental.pallas import tpu as pltpu


def _round_up(x, m):
    return ((x + m - 1) // m) * m


def _pnet_kernel(x_ref, w1_ref, b1_ref, w2_ref, b2_ref, w3_ref, b3_ref, o_ref):
    """Fused 3-layer MLP: sigmoid((relu(x@W1+b1))@W2+b2)@W3+b3 per batch tile."""
    # x arrives as f32 straight from HBM; cast to bf16 here (free under an
    # HBM-bound roofline) so the MXU sees bf16 inputs with f32 accumulation.
    x = x_ref[...].astype(jnp.bfloat16)

    # lin1 + (dropout: identity in eval) + relu
    h1 = jnp.dot(x, w1_ref[...], preferred_element_type=jnp.float32) + b1_ref[...]
    h1 = jnp.maximum(h1, 0.0)

    # lin2 + (dropout: identity in eval)
    h2 = jnp.dot(h1.astype(jnp.bfloat16), w2_ref[...],
                 preferred_element_type=jnp.float32) + b2_ref[...]

    # lin3 + sigmoid (elementwise math in f32 -> safe on v5e), store in out dtype
    h3 = jnp.dot(h2.astype(jnp.bfloat16), w3_ref[...],
                 preferred_element_type=jnp.float32) + b3_ref[...]
    o_ref[...] = jax.nn.sigmoid(h3).astype(o_ref.dtype)
    # TODO(synk): training-mode dropout (p=0.4) would need pltpu.prng_seed /
    # prng_random_bits; eval-mode forward is deterministic so it is omitted.


def prepare_p_net_params(params):
    """Pad + cast weights ONCE (outside the forward path) so no per-call
    zero/scatter/convert HLOs run.

    params: w1 (E,60), b1 (1,60), w2 (60,60), b2 (1,60), w3 (60,O), b3 (1,O),
            all float32, (in, out) layout.
    """
    E, H = params["w1"].shape
    O = params["w3"].shape[1]
    H_pad = _round_up(H, 8)  # sublane-align hidden dim (60 -> 64)

    # Zero pads are exact: padded hidden columns are 0 through relu/matmuls.
    w1 = jnp.zeros((E, H_pad), jnp.bfloat16).at[:, :H].set(params["w1"].astype(jnp.bfloat16))
    w2 = jnp.zeros((H_pad, H_pad), jnp.bfloat16).at[:H, :H].set(params["w2"].astype(jnp.bfloat16))
    w3 = jnp.zeros((H_pad, O), jnp.bfloat16).at[:H, :].set(params["w3"].astype(jnp.bfloat16))
    b1 = jnp.zeros((1, H_pad), jnp.float32).at[:, :H].set(params["b1"])
    b2 = jnp.zeros((1, H_pad), jnp.float32).at[:, :H].set(params["b2"])
    b3 = params["b3"].astype(jnp.float32)
    return {"w1": w1, "b1": b1, "w2": w2, "b2": b2, "w3": w3, "b3": b3}


def p_net_forward(x, prepared, *, block_b=None, out_dtype=jnp.bfloat16):
    """Run the P_net forward pass with a fused Pallas kernel.

    x:        (B, E) float32
    prepared: output of prepare_p_net_params
    Returns (B, input_size) in out_dtype (bf16 by default; pass jnp.float32 to opt out).
    """
    B, E = x.shape
    H_pad = prepared["w1"].shape[1]
    O = prepared["w3"].shape[1]

    # --- batch tiling ---------------------------------------------------------
    if block_b is None:
        block_b = 8192  # amortizes per-step overhead on v5e/v6e, safe on v7x VMEM
    # Cap so the "parallel" batch axis yields >= 2 grid steps whenever B allows:
    # keeps both v7x TensorCores busy and gives the pipeline something to overlap.
    block_b = min(block_b, max(_round_up(pl.cdiv(B, 2), 8), 8))
    # Align: multiple of 8 required; 128 preferred (clean MXU M passes).
    align = 128 if block_b >= 128 else 8
    block_b = _round_up(block_b, align)
    grid = (pl.cdiv(B, block_b),)  # partial last block: Pallas masks its writes

    # --- VMEM budget (includes kernel-body temporaries) -----------------------
    out_isize = jnp.dtype(out_dtype).itemsize
    lane_O = _round_up(O, 128)  # VMEM lane-padded footprint of the output tile
    x_tile = block_b * E * 4
    out_tile = block_b * lane_O * out_isize
    # h1/h2 f32 + their bf16 casts + h3 f32 (lane-padded), per batch row
    temps = block_b * (2 * H_pad * (4 + 2) + lane_O * 4)
    weights = (E * H_pad + H_pad * H_pad + H_pad * O) * 2 + (2 * H_pad + O) * 4
    est = 2 * (x_tile + out_tile) + temps + 2 * weights + (4 << 20)
    vmem_limit = int(min(max(est, 32 << 20), 56 << 20))  # <= ~56 MiB: fits v7x's 64 MiB

    return pl.pallas_call(
        _pnet_kernel,
        out_shape=jax.ShapeDtypeStruct((B, O), out_dtype),
        grid_spec=pltpu.PrefetchScalarGridSpec(
            num_scalar_prefetch=0,
            grid=grid,
            in_specs=[
                # x: tiled over the batch axis; fed as f32 (cast happens in-kernel).
                pl.BlockSpec((block_b, E), lambda i: (i, 0)),
                # Weights / biases: constant index_map -> resident across grid steps.
                pl.BlockSpec((E, H_pad), lambda i: (0, 0)),
                pl.BlockSpec((1, H_pad), lambda i: (0, 0)),
                pl.BlockSpec((H_pad, H_pad), lambda i: (0, 0)),
                pl.BlockSpec((1, H_pad), lambda i: (0, 0)),
                pl.BlockSpec((H_pad, O), lambda i: (0, 0)),
                pl.BlockSpec((1, O), lambda i: (0, 0)),
            ],
            # Exact-width output block (last dim == full array dim): masked stores
            # on the 100/128 lanes, but no padded lanes written and no post-kernel
            # slice/copy pass.
            out_specs=pl.BlockSpec((block_b, O), lambda i: (i, 0)),
        ),
        compiler_params=pltpu.CompilerParams(
            dimension_semantics=("parallel",),
            vmem_limit_bytes=vmem_limit,
        ),
    )(x, prepared["w1"], prepared["b1"], prepared["w2"], prepared["b2"],
      prepared["w3"], prepared["b3"])


def init_p_net_params(key, input_size, encoding_size, hidden=60):
    """nn.Linear-style init (uniform +/- 1/sqrt(fan_in)); weights stored (in, out)."""
    k1, k2, k3, k4, k5, k6 = jax.random.split(key, 6)

    def lin(kw, kb, fan_in, fan_out):
        bound = 1.0 / jnp.sqrt(fan_in)
        w = jax.random.uniform(kw, (fan_in, fan_out), jnp.float32, -bound, bound)
        b = jax.random.uniform(kb, (1, fan_out), jnp.float32, -bound, bound)
        return w, b

    w1, b1 = lin(k1, k2, encoding_size, hidden)
    w2, b2 = lin(k3, k4, hidden, hidden)
    w3, b3 = lin(k5, k6, hidden, input_size)
    return {"w1": w1, "b1": b1, "w2": w2, "b2": b2, "w3": w3, "b3": b3}


def p_net_reference(x, params):
    """Pure-JAX f32 reference for correctness checking."""
    h1 = jnp.maximum(x @ params["w1"] + params["b1"], 0.0)
    h2 = h1 @ params["w2"] + params["b2"]
    h3 = h2 @ params["w3"] + params["b3"]
    return jax.nn.sigmoid(h3)


if __name__ == "__main__":
    key = jax.random.PRNGKey(0)
    k_params, k_x = jax.random.split(key)

    batch = 64
    encoding_size = 32    # latent dim fed into the decoder
    input_size = 100      # reconstructed feature dim (non-multiple of 128 -> masked stores)

    params = init_p_net_params(k_params, input_size, encoding_size)
    prepared = prepare_p_net_params(params)   # pad/cast once, reuse across calls
    x = jax.random.normal(k_x, (batch, encoding_size), dtype=jnp.float32)

    # Default block_b logic gives block_b=32, grid=(2,) at this demo size, so the
    # batch tiling / pipelining / multi-step path is exercised.
    out = p_net_forward(x, prepared)
    out = jax.block_until_ready(out)

    ref = p_net_reference(x, params)
    assert out.shape == (batch, input_size), out.shape
    assert out.dtype == jnp.bfloat16, out.dtype
    # bf16 MXU inputs + bf16 output quantization -> small drift vs. f32 reference.
    err = float(jnp.max(jnp.abs(out.astype(jnp.float32) - ref)))
    assert err < 4e-2, err

    print("KERNEL_OK")
</pallas_src>

<mosaic_0001>
module attributes {stable_mosaic.version = 11 : i64} {
  func.func @_pnet_kernel(%arg0: i32, %arg1: memref<32x32xf32, #tpu.memory_space<vmem>>, %arg2: memref<32x64xbf16, #tpu.memory_space<vmem>>, %arg3: memref<1x64xf32, #tpu.memory_space<vmem>>, %arg4: memref<64x64xbf16, #tpu.memory_space<vmem>>, %arg5: memref<1x64xf32, #tpu.memory_space<vmem>>, %arg6: memref<64x100xbf16, #tpu.memory_space<vmem>>, %arg7: memref<1x100xf32, #tpu.memory_space<vmem>>, %arg8: memref<32x100xbf16, #tpu.memory_space<vmem>>) attributes {dimension_semantics = [#tpu.dimension_semantics<parallel>], iteration_bounds = array<i64: 2>, scalar_prefetch = 0 : i64, scratch_operands = 0 : i64, tpu.core_type = #tpu.core_type<tc>, window_params = [{transform_indices = @transform_0, window_bounds = array<i64: 32, 32>}, {pipeline_mode = #tpu.pipeline_mode<synchronous>, transform_indices = @transform_1, window_bounds = array<i64: 32, 64>}, {pipeline_mode = #tpu.pipeline_mode<synchronous>, transform_indices = @transform_2, window_bounds = array<i64: 1, 64>}, {pipeline_mode = #tpu.pipeline_mode<synchronous>, transform_indices = @transform_3, window_bounds = array<i64: 64, 64>}, {pipeline_mode = #tpu.pipeline_mode<synchronous>, transform_indices = @transform_4, window_bounds = array<i64: 1, 64>}, {pipeline_mode = #tpu.pipeline_mode<synchronous>, transform_indices = @transform_5, window_bounds = array<i64: 64, 100>}, {pipeline_mode = #tpu.pipeline_mode<synchronous>, transform_indices = @transform_6, window_bounds = array<i64: 1, 100>}, {transform_indices = @transform_7, window_bounds = array<i64: 32, 100>}]} {
    %c0 = arith.constant 0 : index
    %c0_0 = arith.constant 0 : index
    %0 = vector.load %arg1[%c0, %c0_0] : memref<32x32xf32, #tpu.memory_space<vmem>>, vector<32x32xf32>
    %1 = arith.truncf %0 : vector<32x32xf32> to vector<32x32xbf16>
    %c0_1 = arith.constant 0 : index
    %c0_2 = arith.constant 0 : index
    %2 = vector.load %arg2[%c0_1, %c0_2] : memref<32x64xbf16, #tpu.memory_space<vmem>>, vector<32x64xbf16>
    %cst = arith.constant dense<0.000000e+00> : vector<32x64xf32>
    %3 = tpu.matmul %1, %2, %cst {dimension_numbers = #tpu.dot_dimension_numbers<[1], [0], [0], [1], [0, 0, 1, 1], [], []>} : vector<32x32xbf16>, vector<32x64xbf16>, vector<32x64xf32> -> vector<32x64xf32>
    %c0_3 = arith.constant 0 : index
    %c0_4 = arith.constant 0 : index
    %4 = vector.load %arg3[%c0_3, %c0_4] : memref<1x64xf32, #tpu.memory_space<vmem>>, vector<1x64xf32>
    %5 = vector.broadcast %4 : vector<1x64xf32> to vector<32x64xf32>
    %6 = arith.addf %3, %5 : vector<32x64xf32>
    %cst_5 = arith.constant 0.000000e+00 : f32
    %7 = vector.broadcast %cst_5 : f32 to vector<32x64xf32>
    %8 = arith.maximumf %6, %7 : vector<32x64xf32>
    %9 = arith.truncf %8 : vector<32x64xf32> to vector<32x64xbf16>
    %c0_6 = arith.constant 0 : index
    %c0_7 = arith.constant 0 : index
    %10 = vector.load %arg4[%c0_6, %c0_7] : memref<64x64xbf16, #tpu.memory_space<vmem>>, vector<64x64xbf16>
    %cst_8 = arith.constant dense<0.000000e+00> : vector<32x64xf32>
    %11 = tpu.matmul %9, %10, %cst_8 {dimension_numbers = #tpu.dot_dimension_numbers<[1], [0], [0], [1], [0, 0, 1, 1], [], []>} : vector<32x64xbf16>, vector<64x64xbf16>, vector<32x64xf32> -> vector<32x64xf32>
    %c0_9 = arith.constant 0 : index
    %c0_10 = arith.constant 0 : index
    %12 = vector.load %arg5[%c0_9, %c0_10] : memref<1x64xf32, #tpu.memory_space<vmem>>, vector<1x64xf32>
    %13 = vector.broadcast %12 : vector<1x64xf32> to vector<32x64xf32>
    %14 = arith.addf %11, %13 : vector<32x64xf32>
    %15 = arith.truncf %14 : vector<32x64xf32> to vector<32x64xbf16>
    %c0_11 = arith.constant 0 : index
    %c0_12 = arith.constant 0 : index
    %16 = vector.load %arg6[%c0_11, %c0_12] : memref<64x100xbf16, #tpu.memory_space<vmem>>, vector<64x100xbf16>
    %cst_13 = arith.constant dense<0.000000e+00> : vector<32x100xf32>
    %17 = tpu.matmul %15, %16, %cst_13 {dimension_numbers = #tpu.dot_dimension_numbers<[1], [0], [0], [1], [0, 0, 1, 1], [], []>} : vector<32x64xbf16>, vector<64x100xbf16>, vector<32x100xf32> -> vector<32x100xf32>
    %c0_14 = arith.constant 0 : index
    %c0_15 = arith.constant 0 : index
    %18 = vector.load %arg7[%c0_14, %c0_15] : memref<1x100xf32, #tpu.memory_space<vmem>>, vector<1x100xf32>
    %19 = vector.broadcast %18 : vector<1x100xf32> to vector<32x100xf32>
    %20 = arith.addf %17, %19 : vector<32x100xf32>
    %21 = arith.negf %20 : vector<32x100xf32>
    %22 = math.exp %21 : vector<32x100xf32>
    %cst_16 = arith.constant 1.000000e+00 : f32
    %23 = vector.broadcast %cst_16 : f32 to vector<32x100xf32>
    %24 = arith.addf %23, %22 : vector<32x100xf32>
    %25 = arith.divf %23, %24 : vector<32x100xf32>
    %26 = arith.truncf %25 : vector<32x100xf32> to vector<32x100xbf16>
    %c0_17 = arith.constant 0 : index
    %c0_18 = arith.constant 0 : index
    %27 = vector.load %arg8[%c0_17, %c0_18] : memref<32x100xbf16, #tpu.memory_space<vmem>>, vector<32x100xbf16>
    tpu.vector_store %arg8[%c0_17, %c0_18], %26 {strides = array<i32>} : memref<32x100xbf16, #tpu.memory_space<vmem>>, vector<32x100xbf16>,
    return
  }
  func.func @transform_0(%arg0: i32) -> (i32, i32) {
    %c0_i32 = arith.constant 0 : i32
    %c0_i32_0 = arith.constant 0 : i32
    return %arg0, %c0_i32 : i32, i32
  }
  func.func @transform_1(%arg0: i32) -> (i32, i32) {
    %c0_i32 = arith.constant 0 : i32
    %c0_i32_0 = arith.constant 0 : i32
    %c0_i32_1 = arith.constant 0 : i32
    return %c0_i32, %c0_i32_0 : i32, i32
  }
  func.func @transform_2(%arg0: i32) -> (i32, i32) {
    %c0_i32 = arith.constant 0 : i32
    %c0_i32_0 = arith.constant 0 : i32
    %c0_i32_1 = arith.constant 0 : i32
    return %c0_i32, %c0_i32_0 : i32, i32
  }
  func.func @transform_3(%arg0: i32) -> (i32, i32) {
    %c0_i32 = arith.constant 0 : i32
    %c0_i32_0 = arith.constant 0 : i32
    %c0_i32_1 = arith.constant 0 : i32
    return %c0_i32, %c0_i32_0 : i32, i32
  }
  func.func @transform_4(%arg0: i32) -> (i32, i32) {
    %c0_i32 = arith.constant 0 : i32
    %c0_i32_0 = arith.constant 0 : i32
    %c0_i32_1 = arith.constant 0 : i32
    return %c0_i32, %c0_i32_0 : i32, i32
  }
  func.func @transform_5(%arg0: i32) -> (i32, i32) {
    %c0_i32 = arith.constant 0 : i32
    %c0_i32_0 = arith.constant 0 : i32
    %c0_i32_1 = arith.constant 0 : i32
    return %c0_i32, %c0_i32_0 : i32, i32
  }
  func.func @transform_6(%arg0: i32) -> (i32, i32) {
    %c0_i32 = arith.constant 0 : i32
    %c0_i32_0 = arith.constant 0 : i32
    %c0_i32_1 = arith.constant 0 : i32
    return %c0_i32, %c0_i32_0 : i32, i32
  }
  func.func @transform_7(%arg0: i32) -> (i32, i32) {
    %c0_i32 = arith.constant 0 : i32
    %c0_i32_0 = arith.constant 0 : i32
    return %arg0, %c0_i32 : i32, i32
  }
}

</mosaic_0001>

<llo_original>
// kernel: tpu_custom_call.1
$region0: #{tpu_custom_call.1}
  #allocation0 [shape = 'u32[]', space=smem, size = 0x4, offset = 0x4, fixed_abs, tag = 'smem constant byte address 0x4 - core index']
  #allocation1 [shape = 'u32[144,128]{1,0:T(1,128)}', space=vmem, size = 0x12000, scoped, tag = 'internal scratch']
  %s0 = inlined_call_operand.vmem [shape: f32[64,32], index: 0, kind: input, shape index: {}]
  %s1 = inlined_call_operand.vmem [shape: bf16[32,64], index: 1, kind: input, shape index: {}]
  %s2 = inlined_call_operand.vmem [shape: f32[1,64], index: 2, kind: input, shape index: {}]
  %s3 = inlined_call_operand.vmem [shape: bf16[64,64], index: 3, kind: input, shape index: {}]
  %s4 = inlined_call_operand.vmem [shape: f32[1,64], index: 4, kind: input, shape index: {}]
  %s5 = inlined_call_operand.vmem [shape: bf16[64,100], index: 5, kind: input, shape index: {}]
  %s6 = inlined_call_operand.vmem [shape: f32[1,100], index: 6, kind: input, shape index: {}]
  %s7 = inlined_call_operand.hbm [shape: bf16[64,100], index: 7, kind: output, shape index: {}]
  %s8 = sld [smem:[#allocation0]]
  $region61: #{tpu_custom_call.1} parent=0
    _
  %s10 = ssub.s32 1, %s8
  %s11 = scalar_select 0, %s10, %s8
  $region1: #{tpu_custom_call.1} parent=0
    #allocation2 [shape = 'u8[16384]{0}', space=vmem, size = 0x4000, scoped, tag = 'output window, operand 0']
    #allocation3 [shape = 's32[2]{0}', space=sflag, size = 0x8, scoped, tag = 'scoped memory for tpu_custom_call.1']
    %12 = vsyncpa [#allocation3], 0
    %s13 = scalar_lea.sflag [#allocation3], 1
    %14 = vsyncpa %s13, 0
    loop: start=0, step=1, limit=4
    $region2: #{tpu_custom_call.1} parent=1 // loop_pre_header
      _
    $region3: #{tpu_custom_call.1} parent=1 // loop_header
      %s16 = sphi 0, %s20
      %p17 = scmp.ge.s32.totalorder %s16, 4
      %s26 = sphi 0, %s28
      %s29 = sphi 0, %s26
      %s30 = sphi 0, %s29
      %s46 = sphi 0, %s30
      %s50 = sphi 0, %s50
      %s52 = sphi 0, %s50
      %s53 = sphi 0, %s52
      %s67 = sphi 0, %s53
      %s71 = sphi 0, %s71
      %s73 = sphi 0, %s71
      %s74 = sphi 0, %s73
      %s88 = sphi 0, %s74
      %s92 = sphi 0, %s92
      %s94 = sphi 0, %s92
      %s95 = sphi 0, %s94
      %s109 = sphi 0, %s95
      %s113 = sphi 0, %s113
      %s115 = sphi 0, %s113
      %s116 = sphi 0, %s115
      %s130 = sphi 0, %s116
      %s134 = sphi 0, %s134
      %s136 = sphi 0, %s134
      %s137 = sphi 0, %s136
      %s151 = sphi 0, %s137
      %s155 = sphi 0, %s155
      %s157 = sphi 0, %s155
      %s158 = sphi 0, %s157
      %s172 = sphi 0, %s158
      %s178 = sphi 0, %s180
      %s181 = sphi 0, %s178
      %s182 = sphi 0, %s181
      %s198 = sphi 0, %s182
    $region4: #{tpu_custom_call.1} parent=1 // loop_header_branch
      %19 = sbr.rel (%p17) target = $region8
    $region5: #{tpu_custom_call.1} parent=1 // loop_body
      %s21 = ssub.s32 %s16, 1
      %s22 = ssub.s32 %s16, 2
      %s23 = sadd.s32 %s16, 1
      %s24 = ssub.s32 %s16, %s23
      %p25 = scmp.eq.s32.totalorder %s24, 0
      %s27 = sadd.s32 %s26, 1
      %s28 = scalar_select %p25, %s26, %s27
      %p31 = pneg %p25
      %p32 = scmp.eq.s32.totalorder %s16, 1
      %p33 = por %p31, %p32
      %p34 = scmp.ne.s32.totalorder %s26, %s29
      %p35 = scmp.eq.s32.totalorder %s16, 0
      %p36 = por %p34, %p35
      %p37 = scmp.ne.s32.totalorder %s26, %s29
      %p38 = scmp.eq.s32.totalorder %s21, 1
      %p39 = por %p37, %p38
      %p40 = scmp.ne.s32.totalorder %s29, %s30
      %p41 = scmp.eq.s32.totalorder %s21, 0
      %p42 = por %p40, %p41
      %p43 = scmp.ne.s32.totalorder %s29, %s30
      %p44 = scmp.eq.s32.totalorder %s22, 1
      %p45 = por %p43, %p44
      %p47 = scmp.ne.s32.totalorder %s30, %s46
      %p48 = scmp.eq.s32.totalorder %s22, 0
      %p49 = por %p47, %p48
      %s51 = sadd.s32 %s50, 1
      %p54 = scmp.eq.s32.totalorder %s16, 1
      %p55 = scmp.ne.s32.totalorder %s50, %s52
      %p56 = scmp.eq.s32.totalorder %s16, 0
      %p57 = por %p55, %p56
      %p58 = scmp.ne.s32.totalorder %s50, %s52
      %p59 = scmp.eq.s32.totalorder %s21, 1
      %p60 = por %p58, %p59
      %p61 = scmp.ne.s32.totalorder %s52, %s53
      %p62 = scmp.eq.s32.totalorder %s21, 0
      %p63 = por %p61, %p62
      %p64 = scmp.ne.s32.totalorder %s52, %s53
      %p65 = scmp.eq.s32.totalorder %s22, 1
      %p66 = por %p64, %p65
      %p68 = scmp.ne.s32.totalorder %s53, %s67
      %p69 = scmp.eq.s32.totalorder %s22, 0
      %p70 = por %p68, %p69
      %s72 = sadd.s32 %s71, 1
      %p75 = scmp.eq.s32.totalorder %s16, 1
      %p76 = scmp.ne.s32.totalorder %s71, %s73
      %p77 = scmp.eq.s32.totalorder %s16, 0
      %p78 = por %p76, %p77
      %p79 = scmp.ne.s32.totalorder %s71, %s73
      %p80 = scmp.eq.s32.totalorder %s21, 1
      %p81 = por %p79, %p80
      %p82 = scmp.ne.s32.totalorder %s73, %s74
      %p83 = scmp.eq.s32.totalorder %s21, 0
      %p84 = por %p82, %p83
      %p85 = scmp.ne.s32.totalorder %s73, %s74
      %p86 = scmp.eq.s32.totalorder %s22, 1
      %p87 = por %p85, %p86
      %p89 = scmp.ne.s32.totalorder %s74, %s88
      %p90 = scmp.eq.s32.totalorder %s22, 0
      %p91 = por %p89, %p90
      %s93 = sadd.s32 %s92, 1
      %p96 = scmp.eq.s32.totalorder %s16, 1
      %p97 = scmp.ne.s32.totalorder %s92, %s94
      %p98 = scmp.eq.s32.totalorder %s16, 0
      %p99 = por %p97, %p98
      %p100 = scmp.ne.s32.totalorder %s92, %s94
      %p101 = scmp.eq.s32.totalorder %s21, 1
      %p102 = por %p100, %p101
      %p103 = scmp.ne.s32.totalorder %s94, %s95
      %p104 = scmp.eq.s32.totalorder %s21, 0
      %p105 = por %p103, %p104
      %p106 = scmp.ne.s32.totalorder %s94, %s95
      %p107 = scmp.eq.s32.totalorder %s22, 1
      %p108 = por %p106, %p107
      %p110 = scmp.ne.s32.totalorder %s95, %s109
      %p111 = scmp.eq.s32.totalorder %s22, 0
      %p112 = por %p110, %p111
      %s114 = sadd.s32 %s113, 1
      %p117 = scmp.eq.s32.totalorder %s16, 1
      %p118 = scmp.ne.s32.totalorder %s113, %s115
      %p119 = scmp.eq.s32.totalorder %s16, 0
      %p120 = por %p118, %p119
      %p121 = scmp.ne.s32.totalorder %s113, %s115
      %p122 = scmp.eq.s32.totalorder %s21, 1
      %p123 = por %p121, %p122
      %p124 = scmp.ne.s32.totalorder %s115, %s116
      %p125 = scmp.eq.s32.totalorder %s21, 0
      %p126 = por %p124, %p125
      %p127 = scmp.ne.s32.totalorder %s115, %s116
      %p128 = scmp.eq.s32.totalorder %s22, 1
      %p129 = por %p127, %p128
      %p131 = scmp.ne.s32.totalorder %s116, %s130
      %p132 = scmp.eq.s32.totalorder %s22, 0
      %p133 = por %p131, %p132
      %s135 = sadd.s32 %s134, 1
      %p138 = scmp.eq.s32.totalorder %s16, 1
      %p139 = scmp.ne.s32.totalorder %s134, %s136
      %p140 = scmp.eq.s32.totalorder %s16, 0
      %p141 = por %p139, %p140
      %p142 = scmp.ne.s32.totalorder %s134, %s136
      %p143 = scmp.eq.s32.totalorder %s21, 1
      %p144 = por %p142, %p143
      %p145 = scmp.ne.s32.totalorder %s136, %s137
      %p146 = scmp.eq.s32.totalorder %s21, 0
      %p147 = por %p145, %p146
      %p148 = scmp.ne.s32.totalorder %s136, %s137
      %p149 = scmp.eq.s32.totalorder %s22, 1
      %p150 = por %p148, %p149
      %p152 = scmp.ne.s32.totalorder %s137, %s151
      %p153 = scmp.eq.s32.totalorder %s22, 0
      %p154 = por %p152, %p153
      %s156 = sadd.s32 %s155, 1
      %p159 = scmp.eq.s32.totalorder %s16, 1
      %p160 = scmp.ne.s32.totalorder %s155, %s157
      %p161 = scmp.eq.s32.totalorder %s16, 0
      %p162 = por %p160, %p161
      %p163 = scmp.ne.s32.totalorder %s155, %s157
      %p164 = scmp.eq.s32.totalorder %s21, 1
      %p165 = por %p163, %p164
      %p166 = scmp.ne.s32.totalorder %s157, %s158
      %p167 = scmp.eq.s32.totalorder %s21, 0
      %p168 = por %p166, %p167
      %p169 = scmp.ne.s32.totalorder %s157, %s158
      %p170 = scmp.eq.s32.totalorder %s22, 1
      %p171 = por %p169, %p170
      %p173 = scmp.ne.s32.totalorder %s158, %s172
      %p174 = scmp.eq.s32.totalorder %s22, 0
      %p175 = por %p173, %p174
      %s176 = ssub.s32 %s16, %s23
      %p177 = scmp.eq.s32.totalorder %s176, 0
      %s179 = sadd.s32 %s178, 1
      %s180 = scalar_select %p177, %s178, %s179
      %p183 = pneg %p177
      %p184 = scmp.eq.s32.totalorder %s16, 1
      %p185 = por %p183, %p184
      %p186 = scmp.ne.s32.totalorder %s178, %s181
      %p187 = scmp.eq.s32.totalorder %s16, 0
      %p188 = por %p186, %p187
      %p189 = scmp.ne.s32.totalorder %s178, %s181
      %p190 = scmp.eq.s32.totalorder %s21, 1
      %p191 = por %p189, %p190
      %p192 = scmp.ne.s32.totalorder %s181, %s182
      %p193 = scmp.eq.s32.totalorder %s21, 0
      %p194 = por %p192, %p193
      %p195 = scmp.ne.s32.totalorder %s181, %s182
      %p196 = scmp.eq.s32.totalorder %s22, 1
      %p197 = por %p195, %p196
      %p199 = scmp.ne.s32.totalorder %s182, %s198
      %p200 = scmp.eq.s32.totalorder %s22, 0
      %p201 = por %p199, %p200
      %p202 = scmp.le.s32.totalorder 1, %s16
      %p203 = scmp.lt.s32.totalorder %s16, 3
      %p204 = pnand %p202, %p203
      %p205 = pneg %p204
      // Predicated region
      $region9: #{tpu_custom_call.1} parent=5 // pred_check
        _
      $region10: #{tpu_custom_call.1} parent=5 // pred_check_branch
        %207 = sbr.rel (%p204) target = $region12
      $region11: #{tpu_custom_call.1} parent=5 // pred_region
        %s208 = ssub.s32 %s16, 1
        // Predicated region
        $region13: #{tpu_custom_call.1} parent=11 // pred_check
          %p209 = pneg %p63
        $region14: #{tpu_custom_call.1} parent=11 // pred_check_branch
          %211 = sbr.rel (%p209) target = $region16
        $region15: #{tpu_custom_call.1} parent=11 // pred_region
          _
        $region16: #{tpu_custom_call.1} parent=11 // pred_fallthru
          _
        // Predicated region
        $region17: #{tpu_custom_call.1} parent=11 // pred_check
          %p212 = pneg %p84
        $region18: #{tpu_custom_call.1} parent=11 // pred_check_branch
          %214 = sbr.rel (%p212) target = $region20
        $region19: #{tpu_custom_call.1} parent=11 // pred_region
          _
        $region20: #{tpu_custom_call.1} parent=11 // pred_fallthru
          _
        // Predicated region
        $region21: #{tpu_custom_call.1} parent=11 // pred_check
          %p215 = pneg %p105
        $region22: #{tpu_custom_call.1} parent=11 // pred_check_branch
          %217 = sbr.rel (%p215) target = $region24
        $region23: #{tpu_custom_call.1} parent=11 // pred_region
          _
        $region24: #{tpu_custom_call.1} parent=11 // pred_fallthru
          _
        // Predicated region
        $region25: #{tpu_custom_call.1} parent=11 // pred_check
          %p218 = pneg %p126
        $region26: #{tpu_custom_call.1} parent=11 // pred_check_branch
          %220 = sbr.rel (%p218) target = $region28
        $region27: #{tpu_custom_call.1} parent=11 // pred_region
          _
        $region28: #{tpu_custom_call.1} parent=11 // pred_fallthru
          _
        // Predicated region
        $region29: #{tpu_custom_call.1} parent=11 // pred_check
          %p221 = pneg %p147
        $region30: #{tpu_custom_call.1} parent=11 // pred_check_branch
          %223 = sbr.rel (%p221) target = $region32
        $region31: #{tpu_custom_call.1} parent=11 // pred_region
          _
        $region32: #{tpu_custom_call.1} parent=11 // pred_fallthru
          _
        // Predicated region
        $region33: #{tpu_custom_call.1} parent=11 // pred_check
          %p224 = pneg %p168
        $region34: #{tpu_custom_call.1} parent=11 // pred_check_branch
          %226 = sbr.rel (%p224) target = $region36
        $region35: #{tpu_custom_call.1} parent=11 // pred_region
          _
        $region36: #{tpu_custom_call.1} parent=11 // pred_fallthru
          _
      $region12: #{tpu_custom_call.1} parent=5 // pred_fallthru
        _
      %p227 = scmp.lt.s32.totalorder %s16, 2
      // Predicated region
      $region37: #{tpu_custom_call.1} parent=5 // pred_check
        %p228 = pneg %p227
      $region38: #{tpu_custom_call.1} parent=5 // pred_check_branch
        %230 = sbr.rel (%p228) target = $region40
      $region39: #{tpu_custom_call.1} parent=5 // pred_region
        // Predicated region
        $region41: #{tpu_custom_call.1} parent=39 // pred_check
          %p231 = pneg %p36
        $region42: #{tpu_custom_call.1} parent=39 // pred_check_branch
          %233 = sbr.rel (%p231) target = $region44
        $region43: #{tpu_custom_call.1} parent=39 // pred_region
          %s234 = smul.u32 4, %s16
          %p235 = scmp.lt.s32.totalorder %s234, 7
          %s236 = scalar_select %p235, %s234, 7
          %s237 = smul.addr %s236, 8
          %s238 = scalar_lea.vmem %s0, %s237
          %s239 = smul.u32 4, %s16
        $region44: #{tpu_custom_call.1} parent=39 // pred_fallthru
          _
      $region40: #{tpu_custom_call.1} parent=5 // pred_fallthru
        _
      %p240 = scmp.le.s32.totalorder 1, %s16
      %p241 = scmp.lt.s32.totalorder %s16, 3
      %p242 = pnand %p240, %p241
      %p243 = pneg %p242
      // Predicated region
      $region45: #{tpu_custom_call.1} parent=5 // pred_check
        _
      $region46: #{tpu_custom_call.1} parent=5 // pred_check_branch
        %245 = sbr.rel (%p242) target = $region48
      $region47: #{tpu_custom_call.1} parent=5 // pred_region
        %s246 = ssub.s32 %s16, 1
        %s247 = smul.u32 4, %s21
        %p248 = scmp.lt.s32.totalorder %s247, 7
        %s249 = scalar_select %p248, %s247, 7
        %s250 = smul.addr %s249, 8
        %s251 = scalar_lea.vmem %s0, %s250
        %p252 = pneg %p42
        %p253 = pneg %p39
        %p254 = pneg %p63
        %p255 = pneg %p60
        %p256 = pneg %p84
        %p257 = pneg %p81
        %p258 = pneg %p105
        %p259 = pneg %p102
        %p260 = pneg %p126
        %p261 = pneg %p123
        %p262 = pneg %p147
        %p263 = pneg %p144
        %p264 = pneg %p168
        %p265 = pneg %p165
        %p266 = pneg %p194
        %p267 = pneg %p191
        %s268 = sand.u32 %s181, 1
        %s269 = scalar_lea.sflag [#allocation3], %s268
        %s270 = sand.u32 %s181, 1
        %s271 = smul.addr %s270, 16
        %s272 = scalar_lea.vmem [#allocation2], %s271
        %s273 = smul.u32 4, %s21
        %p274 = scmp.lt.s32.totalorder %s273, 7
        %s275 = scalar_select %p274, %s273, 7
        %s276 = smul.addr %s275, 8
        %s277 = scalar_lea.vmem %s0, %s276
        %s278 = smul.u32 4, %s21
        %s279 = smul.u32 4, %s21
        %v281 = vld [vmem:[%s277] sm:$0xff]
        %v282 = vld [vmem:[%s277 + $0x8] sm:$0xff]
        %v283 = vld [vmem:[%s277 + $0x10] sm:$0xff]
        %v284 = vld [vmem:[%s277 + $0x18] sm:$0xff]
        %v285 = vpack.c.bf16 %v282, %v281
        %v286 = vpack.c.bf16 %v284, %v283
        %v287 = vld [vmem:[%s1] sm:$0xf]
        %v288 = vld [vmem:[%s1 + $0x4] sm:$0xf]
        %v289 = vld [vmem:[%s1 + $0x8] sm:$0xf]
        %v290 = vld [vmem:[%s1 + $0xc] sm:$0xf]
        %v291 = vld [vmem:[%s2] sm:$0x1]
        %v293 = vlaneseq
        %v294 = vshrl.u32 %v293, 7
        %v295 = vsub.s32 0, %v294
        %v296 = vrot.slane %v291, %v295
        %v302 = vunpack.c.l.b16 %v287
        %v303 = vunpack.c.l.b16 %v288
        %v304 = vunpack.c.l.b16 %v289
        %v305 = vunpack.c.l.b16 %v290
        %v306 = vpack.c.b16 %v303, %v302
        %v307 = vpack.c.b16 %v305, %v304
        %vm310 = vcmask 261120
        %v312 = vsel %vm310, %v285, 0
        %v315 = vsel %vm310, %v286, 0
        %317 = vmatprep.subr.bf16.mxu0 0
        %318 = vmatpush1.bf16.msra.mxu0 %v306
        %319 = vmatprep.subr.bf16.mxu0 0
        %320 = vmatpush1.bf16.msra.mxu0 %v307
        %321 = vmatprep.subr.bf16.mxu0 0
        %322 = vmatpush1.bf16.msra.mxu0 0
        %323 = vmatprep.subr.bf16.mxu0 0
        %324 = vmatpush1.bf16.msra.mxu0 0
        %325 = vmatprep.subr.bf16.mxu0 0
        %326 = vmatpush1.bf16.msra.mxu0 0
        %327 = vmatprep.subr.bf16.mxu0 0
        %328 = vmatpush1.bf16.msra.mxu0 0
        %329 = vmatprep.subr.bf16.mxu0 0
        %330 = vmatpush1.bf16.msra.mxu0 0
        %331 = vmatprep.subr.bf16.mxu0 0
        %332 = vmatpush1.bf16.msra.mxu0 0
        %333 = vmatprep.subr.bf16.mxu0 0
        %334 = vmatpush1.bf16.msra.mxu0 0
        %335 = vmatprep.subr.bf16.mxu0 0
        %336 = vmatpush1.bf16.msra.mxu0 0
        %337 = vmatprep.subr.bf16.mxu0 0
        %338 = vmatpush1.bf16.msra.mxu0 0
        %339 = vmatprep.subr.bf16.mxu0 0
        %340 = vmatpush1.bf16.msra.mxu0 0
        %341 = vmatprep.subr.bf16.mxu0 0
        %342 = vmatpush1.bf16.msra.mxu0 0
        %343 = vmatprep.subr.bf16.mxu0 0
        %344 = vmatpush1.bf16.msra.mxu0 0
        %345 = vmatprep.subr.bf16.mxu0 0
        %346 = vmatpush1.bf16.msra.mxu0 0
        %347 = vmatprep.subr.bf16.mxu0 0
        %348 = vmatpush1.bf16.msra.mxu0 0
        %349 = vmatprep.mubr.bf16.mxu0 0
        %350 = vmatmul.mubr.bf16.gmra.mrb[0].mxu0 %v312
        %v351 = vpop.f32.mrb[0].mxu0
        %v352 = vadd.f32 %v296, %v351
        %v353 = vpop.f32.mrb[0].mxu0
        %v354 = vpop.f32.mrb[0].mxu0
        %v355 = vadd.f32 %v296, %v354
        %v356 = vpop.f32.mrb[0].mxu0
        %357 = vmatprep.mubr.bf16.mxu0 0
        %358 = vmatmul.mubr.bf16.gmra.mrb[0].mxu0 %v315
        %v359 = vpop.f32.mrb[0].mxu0
        %v360 = vadd.f32 %v296, %v359
        %v361 = vpop.f32.mrb[0].mxu0
        %v362 = vpop.f32.mrb[0].mxu0
        %v363 = vadd.f32 %v296, %v362
        %v364 = vpop.f32.mrb[0].mxu0
        %365 = vdwg.mxu0
        %v366 = vmax.f32 %v352, 0.0
        %v367 = vmax.f32 %v355, 0.0
        %v368 = vmax.f32 %v360, 0.0
        %v369 = vmax.f32 %v363, 0.0
        %v370 = vpack.c.bf16 %v367, %v366
        %v371 = vpack.c.bf16 %v369, %v368
        %v372 = vld [vmem:[%s3] sm:$0xf]
        %v373 = vld [vmem:[%s3 + $0x4] sm:$0xf]
        %v374 = vld [vmem:[%s3 + $0x8] sm:$0xf]
        %v375 = vld [vmem:[%s3 + $0xc] sm:$0xf]
        %v376 = vld [vmem:[%s3 + $0x10] sm:$0xf]
        %v377 = vld [vmem:[%s3 + $0x14] sm:$0xf]
        %v378 = vld [vmem:[%s3 + $0x18] sm:$0xf]
        %v379 = vld [vmem:[%s3 + $0x1c] sm:$0xf]
        %v380 = vld [vmem:[%s4] sm:$0x1]
        %v382 = vlaneseq
        %v383 = vshrl.u32 %v382, 7
        %v384 = vsub.s32 0, %v383
        %v385 = vrot.slane %v380, %v384
        %v395 = vunpack.c.l.b16 %v372
        %v396 = vunpack.c.l.b16 %v373
        %v397 = vunpack.c.l.b16 %v374
        %v398 = vunpack.c.l.b16 %v375
        %v399 = vunpack.c.l.b16 %v376
        %v400 = vunpack.c.l.b16 %v377
        %v401 = vunpack.c.l.b16 %v378
        %v402 = vunpack.c.l.b16 %v379
        %v403 = vpack.c.b16 %v396, %v395
        %v404 = vpack.c.b16 %v398, %v397
        %v405 = vpack.c.b16 %v400, %v399
        %v406 = vpack.c.b16 %v402, %v401
        %vm411 = vcmask 523264
        %v413 = vsel %vm411, %v370, 0
        %v416 = vsel %vm411, %v371, 0
        %418 = vmatprep.subr.bf16.mxu0 0
        %419 = vmatpush1.bf16.msra.mxu0 %v403
        %420 = vmatprep.subr.bf16.mxu0 0
        %421 = vmatpush1.bf16.msra.mxu0 %v404
        %422 = vmatprep.subr.bf16.mxu0 0
        %423 = vmatpush1.bf16.msra.mxu0 %v405
        %424 = vmatprep.subr.bf16.mxu0 0
        %425 = vmatpush1.bf16.msra.mxu0 %v406
        %426 = vmatprep.subr.bf16.mxu0 0
        %427 = vmatpush1.bf16.msra.mxu0 0
        %428 = vmatprep.subr.bf16.mxu0 0
        %429 = vmatpush1.bf16.msra.mxu0 0
        %430 = vmatprep.subr.bf16.mxu0 0
        %431 = vmatpush1.bf16.msra.mxu0 0
        %432 = vmatprep.subr.bf16.mxu0 0
        %433 = vmatpush1.bf16.msra.mxu0 0
        %434 = vmatprep.subr.bf16.mxu0 0
        %435 = vmatpush1.bf16.msra.mxu0 0
        %436 = vmatprep.subr.bf16.mxu0 0
        %437 = vmatpush1.bf16.msra.mxu0 0
        %438 = vmatprep.subr.bf16.mxu0 0
        %439 = vmatpush1.bf16.msra.mxu0 0
        %440 = vmatprep.subr.bf16.mxu0 0
        %441 = vmatpush1.bf16.msra.mxu0 0
        %442 = vmatprep.subr.bf16.mxu0 0
        %443 = vmatpush1.bf16.msra.mxu0 0
        %444 = vmatprep.subr.bf16.mxu0 0
        %445 = vmatpush1.bf16.msra.mxu0 0
        %446 = vmatprep.subr.bf16.mxu0 0
        %447 = vmatpush1.bf16.msra.mxu0 0
        %448 = vmatprep.subr.bf16.mxu0 0
        %449 = vmatpush1.bf16.msra.mxu0 0
        %450 = vmatprep.mubr.bf16.mxu0 0
        %451 = vmatmul.mubr.bf16.gmra.mrb[0].mxu0 %v413
        %v452 = vpop.f32.mrb[0].mxu0
        %v453 = vadd.f32 %v385, %v452
        %v454 = vpop.f32.mrb[0].mxu0
        %v455 = vpop.f32.mrb[0].mxu0
        %v456 = vadd.f32 %v385, %v455
        %v457 = vpop.f32.mrb[0].mxu0
        %458 = vmatprep.mubr.bf16.mxu0 0
        %459 = vmatmul.mubr.bf16.gmra.mrb[0].mxu0 %v416
        %v460 = vpop.f32.mrb[0].mxu0
        %v461 = vadd.f32 %v385, %v460
        %v462 = vpop.f32.mrb[0].mxu0
        %v463 = vpop.f32.mrb[0].mxu0
        %v464 = vadd.f32 %v385, %v463
        %v465 = vpop.f32.mrb[0].mxu0
        %466 = vdwg.mxu0
        %v467 = vpack.c.bf16 %v456, %v453
        %v468 = vpack.c.bf16 %v464, %v461
        %v469 = vld [vmem:[%s5] sm:$0xf]
        %v470 = vld [vmem:[%s5 + $0x4] sm:$0xf]
        %v471 = vld [vmem:[%s5 + $0x8] sm:$0xf]
        %v472 = vld [vmem:[%s5 + $0xc] sm:$0xf]
        %v473 = vld [vmem:[%s5 + $0x10] sm:$0xf]
        %v474 = vld [vmem:[%s5 + $0x14] sm:$0xf]
        %v475 = vld [vmem:[%s5 + $0x18] sm:$0xf]
        %v476 = vld [vmem:[%s5 + $0x1c] sm:$0xf]
        %v477 = vld [vmem:[%s6] sm:$0x1]
        %v479 = vlaneseq
        %v480 = vshrl.u32 %v479, 7
        %v481 = vsub.s32 0, %v480
        %v482 = vrot.slane %v477, %v481
        %v492 = vunpack.c.l.b16 %v469
        %v493 = vunpack.c.l.b16 %v470
        %v494 = vunpack.c.l.b16 %v471
        %v495 = vunpack.c.l.b16 %v472
        %v496 = vunpack.c.l.b16 %v473
        %v497 = vunpack.c.l.b16 %v474
        %v498 = vunpack.c.l.b16 %v475
        %v499 = vunpack.c.l.b16 %v476
        %v500 = vpack.c.b16 %v493, %v492
        %v501 = vpack.c.b16 %v495, %v494
        %v502 = vpack.c.b16 %v497, %v496
        %v503 = vpack.c.b16 %v499, %v498
        %v509 = vsel %vm411, %v467, 0
        %v512 = vsel %vm411, %v468, 0
        %514 = vmatprep.subr.bf16.mxu0 0
        %515 = vmatpush1.bf16.msra.mxu0 %v500
        %516 = vmatprep.subr.bf16.mxu0 0
        %517 = vmatpush1.bf16.msra.mxu0 %v501
        %518 = vmatprep.subr.bf16.mxu0 0
        %519 = vmatpush1.bf16.msra.mxu0 %v502
        %520 = vmatprep.subr.bf16.mxu0 0
        %521 = vmatpush1.bf16.msra.mxu0 %v503
        %522 = vmatprep.subr.bf16.mxu0 0
        %523 = vmatpush1.bf16.msra.mxu0 0
        %524 = vmatprep.subr.bf16.mxu0 0
        %525 = vmatpush1.bf16.msra.mxu0 0
        %526 = vmatprep.subr.bf16.mxu0 0
        %527 = vmatpush1.bf16.msra.mxu0 0
        %528 = vmatprep.subr.bf16.mxu0 0
        %529 = vmatpush1.bf16.msra.mxu0 0
        %530 = vmatprep.subr.bf16.mxu0 0
        %531 = vmatpush1.bf16.msra.mxu0 0
        %532 = vmatprep.subr.bf16.mxu0 0
        %533 = vmatpush1.bf16.msra.mxu0 0
        %534 = vmatprep.subr.bf16.mxu0 0
        %535 = vmatpush1.bf16.msra.mxu0 0
        %536 = vmatprep.subr.bf16.mxu0 0
        %537 = vmatpush1.bf16.msra.mxu0 0
        %538 = vmatprep.subr.bf16.mxu0 0
        %539 = vmatpush1.bf16.msra.mxu0 0
        %540 = vmatprep.subr.bf16.mxu0 0
        %541 = vmatpush1.bf16.msra.mxu0 0
        %542 = vmatprep.subr.bf16.mxu0 0
        %543 = vmatpush1.bf16.msra.mxu0 0
        %544 = vmatprep.subr.bf16.mxu0 0
        %545 = vmatpush1.bf16.msra.mxu0 0
        %546 = vmatprep.mubr.bf16.mxu0 0
        %547 = vmatmul.mubr.bf16.gmra.mrb[0].mxu0 %v509
        %v548 = vpop.f32.mrb[0].mxu0
        %v549 = vadd.f32 %v482, %v548
        %v550 = vpop.f32.mrb[0].mxu0
        %v551 = vpop.f32.mrb[0].mxu0
        %v552 = vadd.f32 %v482, %v551
        %v553 = vpop.f32.mrb[0].mxu0
        %554 = vmatprep.mubr.bf16.mxu0 0
        %555 = vmatmul.mubr.bf16.gmra.mrb[0].mxu0 %v512
        %v556 = vpop.f32.mrb[0].mxu0
        %v557 = vadd.f32 %v482, %v556
        %v558 = vpop.f32.mrb[0].mxu0
        %v559 = vpop.f32.mrb[0].mxu0
        %v560 = vadd.f32 %v482, %v559
        %v561 = vpop.f32.mrb[0].mxu0
        %562 = vdwg.mxu0
        %v563 = vxor.u32 %v549, 2147483648
        %v564 = vxor.u32 %v552, 2147483648
        %v565 = vxor.u32 %v557, 2147483648
        %v566 = vxor.u32 %v560, 2147483648
        %v567 = vmul.f32 %v563, 1.442695
        %v568 = vpow.pop %v567
        %v569 = vmul.f32 %v564, 1.442695
        %v570 = vpow.pop %v569
        %v571 = vmul.f32 %v565, 1.442695
        %v572 = vpow.pop %v571
        %v573 = vmul.f32 %v566, 1.442695
        %v574 = vpow.pop %v573
        %v575 = vadd.f32 %v568, 1.0
        %v576 = vadd.f32 %v570, 1.0
        %v577 = vadd.f32 %v572, 1.0
        %v578 = vadd.f32 %v574, 1.0
        %v579 = vrcp.pop %v575
        %v580 = vmul.f32 1.0, %v579
        %v581 = vrcp.pop %v576
        %v582 = vmul.f32 1.0, %v581
        %v583 = vrcp.pop %v577
        %v584 = vmul.f32 1.0, %v583
        %v585 = vrcp.pop %v578
        %v586 = vmul.f32 1.0, %v585
        %v587 = vpack.c.bf16 %v582, %v580
        %v588 = vpack.c.bf16 %v586, %v584
        %v591 = vunpack.c.l.b16 %v587
        %v592 = vunpack.c.h.b16 %v587
        %v593 = vunpack.c.l.b16 %v588
        %v594 = vunpack.c.h.b16 %v588
        %v595 = vpack.c.b16 %v591, %v591
        %v596 = vpack.c.b16 %v592, %v592
        %v597 = vpack.c.b16 %v593, %v593
        %v598 = vpack.c.b16 %v594, %v594
        %vm603 = vcmask 814080
        %604 = vst.msk [vmem:[%s272] sm:$0xf] %vm603, %v595
        %605 = vst.msk [vmem:[%s272 + $0x4] sm:$0xf] %vm603, %v596
        %606 = vst.msk [vmem:[%s272 + $0x8] sm:$0xf] %vm603, %v597
        %607 = vst.msk [vmem:[%s272 + $0xc] sm:$0xf] %vm603, %v598
        %s608 = sand.u32 %s181, 1
        %s609 = scalar_lea.sflag [#allocation3], %s608
        %s610 = sand.u32 %s181, 1
        %s611 = smul.addr %s610, 16
        %s612 = scalar_lea.vmem [#allocation2], %s611
        // Predicated region
        $region49: #{tpu_custom_call.1} parent=47 // pred_check
          %p613 = pneg %p191
        $region50: #{tpu_custom_call.1} parent=47 // pred_check_branch
          %615 = sbr.rel (%p613) target = $region52
        $region51: #{tpu_custom_call.1} parent=47 // pred_region
          %s616 = smul.u32 4, %s21
          %s618 = ssub.s32 256, 256
          %619 = vsyncadd %s609, %s618
          %s620 = smul.addr %s616, 64
          %s621 = scalar_lea.hbm %s7, %s620
          %s622 = sshll.u32 %s612, 4
          %s623 = int_to_ptr.vmem [resolvable:$true] %s622
          %628 = dma.vmem_to_hbm [thread:$0]  %s623, 256, %s621, %s609, 64, 64, 4
        $region52: #{tpu_custom_call.1} parent=47 // pred_fallthru
          _
      $region48: #{tpu_custom_call.1} parent=5 // pred_fallthru
        _
      %p629 = scmp.le.s32.totalorder 2, %s16
      // Predicated region
      $region53: #{tpu_custom_call.1} parent=5 // pred_check
        %p630 = pneg %p629
      $region54: #{tpu_custom_call.1} parent=5 // pred_check_branch
        %632 = sbr.rel (%p630) target = $region56
      $region55: #{tpu_custom_call.1} parent=5 // pred_region
        %s633 = ssub.s32 %s16, 2
        // Predicated region
        $region57: #{tpu_custom_call.1} parent=55 // pred_check
          %p634 = pneg %p197
        $region58: #{tpu_custom_call.1} parent=55 // pred_check_branch
          %636 = sbr.rel (%p634) target = $region60
        $region59: #{tpu_custom_call.1} parent=55 // pred_region
          %s637 = sand.u32 %s182, 1
          %s638 = scalar_lea.sflag [#allocation3], %s637
          %s639 = sand.u32 %s182, 1
          %s640 = smul.addr %s639, 16
          %s641 = scalar_lea.vmem [#allocation2], %s640
          %642 = dma.done %s638, 256
        $region60: #{tpu_custom_call.1} parent=55 // pred_fallthru
          _
      $region56: #{tpu_custom_call.1} parent=5 // pred_fallthru
        _
    $region6: #{tpu_custom_call.1} parent=1 // loop_footer
      %s20 = sadd.s32 1, %s16
    $region7: #{tpu_custom_call.1} parent=1 // loop_footer_branch
      %15 = sbr.rel target = $region3
    $region8: #{tpu_custom_call.1} parent=1 // loop_exit
      _
    %643 = vsyncpa [#allocation3], 1
    %s644 = scalar_lea.sflag [#allocation3], 1
    %645 = vsyncpa %s644, 1

</llo_original>
